<compile_context>
chip_gen: v7x
topology: tpu7x:2x2x1
jax: 0.10.0
libtpu: 0.0.40
codegen_flags: <defaults>
</compile_context>

<pallas_src>
import functools

import jax
import jax.numpy as jnp
from jax.experimental import pallas as pl
from jax.experimental.pallas import tpu as pltpu

_LANES = 128              # vreg lane width
_F32_TEMPS = 6            # live [N, TILE_D] f32 temporaries in the moment loop
_MXU_COLSUM_MAX_N = 128   # above this, ones-row MXU colsum -> XLU sublane sum


def _round_up(x: int, m: int) -> int:
    return ((x + m - 1) // m) * m


def _vmem_capacity_bytes() -> int:
    """Best-effort VMEM capacity query; conservative 64 MiB (v7x) fallback."""
    try:
        return int(pltpu.get_tpu_info().vmem_capacity_bytes)
    except Exception:
        return 64 << 20


def _pick_tile_d(rows_total: int, itemsize: int, d_lane: int,
                 budget: int, tile_cap: int) -> int:
    """Largest lane tile whose double-buffered inputs + f32 temps fit budget."""
    # per lane-column: 2x double-buffered input blocks + ~6 live f32 temps
    bytes_per_col = rows_total * (2 * itemsize + _F32_TEMPS * 4)
    tile = budget // max(bytes_per_col, 1)
    tile = (tile // _LANES) * _LANES
    tile = max(_LANES, min(tile_cap, tile))
    return min(tile, d_lane)


def _cmd_partial_kernel(x1_ref, x2_ref, o_ref, *, n_moments: int,
                        inv_n1: float, inv_n2: float,
                        use_mxu1: bool, use_mxu2: bool):
    x1 = x1_ref[...].astype(jnp.float32)    # [N1, T]
    x2 = x2_ref[...].astype(jnp.float32)    # [N2, T]

    def colmean(x, inv_n, use_mxu):
        if use_mxu:
            # [1,N] @ [N,T] on the MXU; the 1/N scale is folded into the
            # weight row, so no extra [1,T] VPU multiply is needed.
            w = jnp.full((1, x.shape[0]), inv_n, jnp.float32)
            return jnp.dot(w, x, preferred_element_type=jnp.float32)
        # Large batch: XLU sublane reduction instead of an N-tall vmatmul push.
        return jnp.sum(x, axis=0, keepdims=True) * inv_n

    mx1 = colmean(x1, inv_n1, use_mxu1)     # [1, T]
    mx2 = colmean(x2, inv_n2, use_mxu2)     # [1, T]
    sx1 = x1 - mx1                          # [N1, T]
    sx2 = x2 - mx2                          # [N2, T]

    diffs = [mx1 - mx2]                     # moment 1 (un-squared difference)

    # Moments k = 2 .. n_moments with incrementally maintained running powers.
    p1, p2 = sx1, sx2
    for _ in range(n_moments - 1):
        p1 = p1 * sx1
        p2 = p2 * sx2
        diffs.append(colmean(p1, inv_n1, use_mxu1)
                     - colmean(p2, inv_n2, use_mxu2))

    stacked = jnp.concatenate(diffs, axis=0) if n_moments > 1 else diffs[0]
    # Single lane-dense (full-width) store of all per-moment difference rows.
    o_ref[...] = stacked.reshape(o_ref.shape)


def cmd_pallas(x1: jax.Array, x2: jax.Array, n_moments: int,
               *, tile_d: int | None = None) -> jax.Array:
    """CMD discrepancy between sample sets x1:[N1,D], x2:[N2,D] -> scalar f32."""
    assert x1.ndim == 2 and x2.ndim == 2 and x1.shape[1] == x2.shape[1]
    n_moments = int(n_moments)
    assert n_moments >= 1

    N1, D = x1.shape
    N2, _ = x2.shape
    itemsize = max(jnp.dtype(x1.dtype).itemsize, jnp.dtype(x2.dtype).itemsize)

    vmem_cap = _vmem_capacity_bytes()
    small_vmem = vmem_cap <= (64 << 20)           # v7x-class: 64 MiB, 2 TCs
    budget = (20 << 20) if small_vmem else (40 << 20)
    tile_cap = 1024 if small_vmem else 2048
    hard_cap = (48 << 20) if small_vmem else (112 << 20)

    d_lane = _round_up(D, _LANES)
    if tile_d is None:
        tile_d = _pick_tile_d(N1 + N2, itemsize, d_lane, budget, tile_cap)
        if small_vmem and d_lane >= 2 * _LANES:
            # 2 TensorCores per chip: force >= 2 parallel grid tiles.
            half = max(_LANES, (d_lane // 2) // _LANES * _LANES)
            tile_d = min(tile_d, half)
    tile_d = max(_LANES, _round_up(int(tile_d), _LANES))
    tile_d = min(tile_d, d_lane)

    d_pad = _round_up(D, tile_d)
    num_tiles = d_pad // tile_d

    # Zero-pad the feature axis: zero columns contribute 0 to every moment.
    if d_pad != D:
        x1 = jnp.pad(x1, ((0, 0), (0, d_pad - D)))
        x2 = jnp.pad(x2, ((0, 0), (0, d_pad - D)))

    # MXU ones-row colsum for small batches; XLU sublane reduce otherwise.
    use_mxu1 = N1 <= _MXU_COLSUM_MAX_N
    use_mxu2 = N2 <= _MXU_COLSUM_MAX_N
    if not use_mxu1 and not use_mxu2:
        use_mxu1 = True   # both batches large: split MXU / XLU to balance slots

    # Consistent VMEM accounting (matches _pick_tile_d): double-buffered input
    # blocks + ~6 live f32 temps + double-buffered (small) output blocks.
    in_bytes = 2 * (N1 + N2) * tile_d * itemsize
    temp_bytes = (N1 + N2) * tile_d * _F32_TEMPS * 4
    out_bytes = 2 * n_moments * tile_d * 4
    need = in_bytes + temp_bytes + out_bytes
    vmem_limit = int(min(max(2 * need, 32 << 20), hard_cap))

    kernel = functools.partial(
        _cmd_partial_kernel,
        n_moments=n_moments,
        inv_n1=1.0 / N1,
        inv_n2=1.0 / N2,
        use_mxu1=use_mxu1,
        use_mxu2=use_mxu2,
    )

    diffs = pl.pallas_call(
        kernel,
        out_shape=jax.ShapeDtypeStruct((num_tiles, n_moments, tile_d),
                                       jnp.float32),
        grid=(num_tiles,),
        in_specs=[
            pl.BlockSpec((N1, tile_d), lambda i: (0, i)),
            pl.BlockSpec((N2, tile_d), lambda i: (0, i)),
        ],
        out_specs=pl.BlockSpec((1, n_moments, tile_d), lambda i: (i, 0, 0)),
        compiler_params=pltpu.CompilerParams(
            dimension_semantics=("parallel",),
            vmem_limit_bytes=vmem_limit,
        ),
    )(x1, x2)

    # Tiny epilogue: square, reduce over tiles + lanes, one sqrt per moment.
    per_moment = jnp.sum(jnp.square(diffs), axis=(0, 2))   # [n_moments]
    return jnp.sum(jnp.sqrt(per_moment))


def cmd_reference(x1, x2, n_moments):
    """Pure-JAX reference mirroring the PyTorch CMD module."""
    x1 = x1.astype(jnp.float32)
    x2 = x2.astype(jnp.float32)
    mx1 = jnp.mean(x1, 0)
    mx2 = jnp.mean(x2, 0)
    sx1 = x1 - mx1
    sx2 = x2 - mx2
    mn = lambda a, b: jnp.sqrt(jnp.sum((a - b) ** 2))
    scms = mn(mx1, mx2)
    for i in range(n_moments - 1):
        k = i + 2
        scms = scms + mn(jnp.mean(sx1 ** k, 0), jnp.mean(sx2 ** k, 0))
    return scms


if __name__ == "__main__":
    key = jax.random.PRNGKey(0)
    k1, k2 = jax.random.split(key)

    N1, N2, D = 8, 8, 200      # D not a multiple of 128 -> exercises padding
    n_moments = 5

    x1 = jax.random.normal(k1, (N1, D), dtype=jnp.float32)
    x2 = 0.5 * jax.random.normal(k2, (N2, D), dtype=jnp.float32) + 0.1

    ref = cmd_reference(x1, x2, n_moments)

    # Auto tile sizing path.
    out = jax.block_until_ready(cmd_pallas(x1, x2, n_moments))
    assert jnp.allclose(out, ref, rtol=1e-4, atol=1e-4), (out, ref)

    # Explicit small tile -> multi-step "parallel" grid over D.
    out_t = jax.block_until_ready(cmd_pallas(x1, x2, n_moments, tile_d=128))
    assert jnp.allclose(out_t, ref, rtol=1e-4, atol=1e-4), (out_t, ref)

    # bf16 inputs stay bf16 in HBM (half the DMA bytes); math is f32 in-kernel.
    x1b = x1.astype(jnp.bfloat16)
    x2b = x2.astype(jnp.bfloat16)
    ref_b = cmd_reference(x1b, x2b, n_moments)
    out_b = jax.block_until_ready(cmd_pallas(x1b, x2b, n_moments))
    assert jnp.allclose(out_b, ref_b, rtol=1e-3, atol=1e-3), (out_b, ref_b)

    print("KERNEL_OK")
</pallas_src>

<mosaic_0001>
module attributes {stable_mosaic.version = 11 : i64} {
  func.func @_cmd_partial_kernel(%arg0: i32, %arg1: memref<8x128xf32, #tpu.memory_space<vmem>>, %arg2: memref<8x128xf32, #tpu.memory_space<vmem>>, %arg3: memref<1x5x128xf32, #tpu.memory_space<vmem>>) attributes {dimension_semantics = [#tpu.dimension_semantics<parallel>], iteration_bounds = array<i64: 2>, scalar_prefetch = 0 : i64, scratch_operands = 0 : i64, tpu.core_type = #tpu.core_type<tc>, window_params = [{transform_indices = @transform_0, window_bounds = array<i64: 8, 128>}, {transform_indices = @transform_1, window_bounds = array<i64: 8, 128>}, {transform_indices = @transform_2, window_bounds = array<i64: 1, 5, 128>}]} {
    %c0 = arith.constant 0 : index
    %c0_0 = arith.constant 0 : index
    %0 = vector.load %arg1[%c0, %c0_0] : memref<8x128xf32, #tpu.memory_space<vmem>>, vector<8x128xf32>
    %c0_1 = arith.constant 0 : index
    %c0_2 = arith.constant 0 : index
    %1 = vector.load %arg2[%c0_1, %c0_2] : memref<8x128xf32, #tpu.memory_space<vmem>>, vector<8x128xf32>
    %cst = arith.constant 1.250000e-01 : f32
    %2 = vector.broadcast %cst : f32 to vector<1x8xf32>
    %cst_3 = arith.constant dense<0.000000e+00> : vector<1x128xf32>
    %3 = tpu.matmul %2, %0, %cst_3 {dimension_numbers = #tpu.dot_dimension_numbers<[1], [0], [0], [1], [0, 0, 1, 1], [], []>} : vector<1x8xf32>, vector<8x128xf32>, vector<1x128xf32> -> vector<1x128xf32>
    %cst_4 = arith.constant 1.250000e-01 : f32
    %4 = vector.broadcast %cst_4 : f32 to vector<1x8xf32>
    %cst_5 = arith.constant dense<0.000000e+00> : vector<1x128xf32>
    %5 = tpu.matmul %4, %1, %cst_5 {dimension_numbers = #tpu.dot_dimension_numbers<[1], [0], [0], [1], [0, 0, 1, 1], [], []>} : vector<1x8xf32>, vector<8x128xf32>, vector<1x128xf32> -> vector<1x128xf32>
    %6 = vector.broadcast %3 : vector<1x128xf32> to vector<8x128xf32>
    %7 = arith.subf %0, %6 : vector<8x128xf32>
    %8 = vector.broadcast %5 : vector<1x128xf32> to vector<8x128xf32>
    %9 = arith.subf %1, %8 : vector<8x128xf32>
    %10 = arith.subf %3, %5 : vector<1x128xf32>
    %11 = arith.mulf %7, %7 : vector<8x128xf32>
    %12 = arith.mulf %9, %9 : vector<8x128xf32>
    %cst_6 = arith.constant 1.250000e-01 : f32
    %13 = vector.broadcast %cst_6 : f32 to vector<1x8xf32>
    %cst_7 = arith.constant dense<0.000000e+00> : vector<1x128xf32>
    %14 = tpu.matmul %13, %11, %cst_7 {dimension_numbers = #tpu.dot_dimension_numbers<[1], [0], [0], [1], [0, 0, 1, 1], [], []>} : vector<1x8xf32>, vector<8x128xf32>, vector<1x128xf32> -> vector<1x128xf32>
    %cst_8 = arith.constant 1.250000e-01 : f32
    %15 = vector.broadcast %cst_8 : f32 to vector<1x8xf32>
    %cst_9 = arith.constant dense<0.000000e+00> : vector<1x128xf32>
    %16 = tpu.matmul %15, %12, %cst_9 {dimension_numbers = #tpu.dot_dimension_numbers<[1], [0], [0], [1], [0, 0, 1, 1], [], []>} : vector<1x8xf32>, vector<8x128xf32>, vector<1x128xf32> -> vector<1x128xf32>
    %17 = arith.subf %14, %16 : vector<1x128xf32>
    %18 = arith.mulf %11, %7 : vector<8x128xf32>
    %19 = arith.mulf %12, %9 : vector<8x128xf32>
    %cst_10 = arith.constant 1.250000e-01 : f32
    %20 = vector.broadcast %cst_10 : f32 to vector<1x8xf32>
    %cst_11 = arith.constant dense<0.000000e+00> : vector<1x128xf32>
    %21 = tpu.matmul %20, %18, %cst_11 {dimension_numbers = #tpu.dot_dimension_numbers<[1], [0], [0], [1], [0, 0, 1, 1], [], []>} : vector<1x8xf32>, vector<8x128xf32>, vector<1x128xf32> -> vector<1x128xf32>
    %cst_12 = arith.constant 1.250000e-01 : f32
    %22 = vector.broadcast %cst_12 : f32 to vector<1x8xf32>
    %cst_13 = arith.constant dense<0.000000e+00> : vector<1x128xf32>
    %23 = tpu.matmul %22, %19, %cst_13 {dimension_numbers = #tpu.dot_dimension_numbers<[1], [0], [0], [1], [0, 0, 1, 1], [], []>} : vector<1x8xf32>, vector<8x128xf32>, vector<1x128xf32> -> vector<1x128xf32>
    %24 = arith.subf %21, %23 : vector<1x128xf32>
    %25 = arith.mulf %18, %7 : vector<8x128xf32>
    %26 = arith.mulf %19, %9 : vector<8x128xf32>
    %cst_14 = arith.constant 1.250000e-01 : f32
    %27 = vector.broadcast %cst_14 : f32 to vector<1x8xf32>
    %cst_15 = arith.constant dense<0.000000e+00> : vector<1x128xf32>
    %28 = tpu.matmul %27, %25, %cst_15 {dimension_numbers = #tpu.dot_dimension_numbers<[1], [0], [0], [1], [0, 0, 1, 1], [], []>} : vector<1x8xf32>, vector<8x128xf32>, vector<1x128xf32> -> vector<1x128xf32>
    %cst_16 = arith.constant 1.250000e-01 : f32
    %29 = vector.broadcast %cst_16 : f32 to vector<1x8xf32>
    %cst_17 = arith.constant dense<0.000000e+00> : vector<1x128xf32>
    %30 = tpu.matmul %29, %26, %cst_17 {dimension_numbers = #tpu.dot_dimension_numbers<[1], [0], [0], [1], [0, 0, 1, 1], [], []>} : vector<1x8xf32>, vector<8x128xf32>, vector<1x128xf32> -> vector<1x128xf32>
    %31 = arith.subf %28, %30 : vector<1x128xf32>
    %32 = arith.mulf %25, %7 : vector<8x128xf32>
    %33 = arith.mulf %26, %9 : vector<8x128xf32>
    %cst_18 = arith.constant 1.250000e-01 : f32
    %34 = vector.broadcast %cst_18 : f32 to vector<1x8xf32>
    %cst_19 = arith.constant dense<0.000000e+00> : vector<1x128xf32>
    %35 = tpu.matmul %34, %32, %cst_19 {dimension_numbers = #tpu.dot_dimension_numbers<[1], [0], [0], [1], [0, 0, 1, 1], [], []>} : vector<1x8xf32>, vector<8x128xf32>, vector<1x128xf32> -> vector<1x128xf32>
    %cst_20 = arith.constant 1.250000e-01 : f32
    %36 = vector.broadcast %cst_20 : f32 to vector<1x8xf32>
    %cst_21 = arith.constant dense<0.000000e+00> : vector<1x128xf32>
    %37 = tpu.matmul %36, %33, %cst_21 {dimension_numbers = #tpu.dot_dimension_numbers<[1], [0], [0], [1], [0, 0, 1, 1], [], []>} : vector<1x8xf32>, vector<8x128xf32>, vector<1x128xf32> -> vector<1x128xf32>
    %38 = arith.subf %35, %37 : vector<1x128xf32>
    %39 = tpu.concatenate %10, %17, %24, %31, %38 in 0 : vector<1x128xf32>, vector<1x128xf32>, vector<1x128xf32>, vector<1x128xf32>, vector<1x128xf32> -> vector<5x128xf32>
    %40 = vector.shape_cast %39 : vector<5x128xf32> to vector<1x5x128xf32>
    %c0_22 = arith.constant 0 : index
    %c0_23 = arith.constant 0 : index
    %c0_24 = arith.constant 0 : index
    %41 = vector.load %arg3[%c0_22, %c0_23, %c0_24] : memref<1x5x128xf32, #tpu.memory_space<vmem>>, vector<1x5x128xf32>
    tpu.vector_store %arg3[%c0_22, %c0_23, %c0_24], %40 {strides = array<i32>} : memref<1x5x128xf32, #tpu.memory_space<vmem>>, vector<1x5x128xf32>,
    return
  }
  func.func @transform_0(%arg0: i32) -> (i32, i32) {
    %c0_i32 = arith.constant 0 : i32
    %c0_i32_0 = arith.constant 0 : i32
    return %c0_i32, %arg0 : i32, i32
  }
  func.func @transform_1(%arg0: i32) -> (i32, i32) {
    %c0_i32 = arith.constant 0 : i32
    %c0_i32_0 = arith.constant 0 : i32
    return %c0_i32, %arg0 : i32, i32
  }
  func.func @transform_2(%arg0: i32) -> (i32, i32, i32) {
    %c0_i32 = arith.constant 0 : i32
    %c0_i32_0 = arith.constant 0 : i32
    %c0_i32_1 = arith.constant 0 : i32
    return %arg0, %c0_i32, %c0_i32_0 : i32, i32, i32
  }
}

</mosaic_0001>

<llo_original>
// kernel: tpu_custom_call.1
$region0: #{tpu_custom_call.1}
  #allocation0 [shape = 'u32[]', space=smem, size = 0x4, offset = 0x4, fixed_abs, tag = 'smem constant byte address 0x4 - core index']
  #allocation1 [shape = 'u32[144,128]{1,0:T(1,128)}', space=vmem, size = 0x12000, scoped, tag = 'internal scratch']
  %s0 = inlined_call_operand.hbm [shape: f32[8,256], index: 0, kind: input, shape index: {}]
  %s1 = inlined_call_operand.hbm [shape: f32[8,256], index: 1, kind: input, shape index: {}]
  %s2 = inlined_call_operand.vmem [shape: f32[2,5,128], index: 2, kind: output, shape index: {}]
  %s3 = sld [smem:[#allocation0]]
  $region49: #{tpu_custom_call.1} parent=0
    _
  %s5 = ssub.s32 1, %s3
  %s6 = scalar_select 0, %s5, %s3
  $region1: #{tpu_custom_call.1} parent=0
    #allocation2 [shape = 'u8[8192]{0}', space=vmem, size = 0x2000, scoped, tag = 'input window, operand 0']
    #allocation3 [shape = 's32[2]{0}', space=sflag, size = 0x8, scoped, tag = 'scoped memory for tpu_custom_call.1']
    #allocation4 [shape = 'u8[8192]{0}', space=vmem, size = 0x2000, scoped, tag = 'input window, operand 1']
    #allocation5 [shape = 's32[2]{0}', space=sflag, size = 0x8, scoped, tag = 'scoped memory for tpu_custom_call.1']
    %7 = vsyncpa [#allocation3], 0
    %s8 = scalar_lea.sflag [#allocation3], 1
    %9 = vsyncpa %s8, 0
    %10 = vsyncpa [#allocation5], 0
    %s11 = scalar_lea.sflag [#allocation5], 1
    %12 = vsyncpa %s11, 0
    loop: start=0, step=1, limit=4
    $region2: #{tpu_custom_call.1} parent=1 // loop_pre_header
      _
    $region3: #{tpu_custom_call.1} parent=1 // loop_header
      %s14 = sphi 0, %s18
      %p15 = scmp.ge.s32.totalorder %s14, 4
      %s24 = sphi 0, %s26
      %s27 = sphi 0, %s24
      %s28 = sphi 0, %s27
      %s44 = sphi 0, %s28
      %s50 = sphi 0, %s52
      %s53 = sphi 0, %s50
      %s54 = sphi 0, %s53
      %s70 = sphi 0, %s54
      %s76 = sphi 0, %s78
      %s79 = sphi 0, %s76
      %s80 = sphi 0, %s79
      %s96 = sphi 0, %s80
    $region4: #{tpu_custom_call.1} parent=1 // loop_header_branch
      %17 = sbr.rel (%p15) target = $region8
    $region5: #{tpu_custom_call.1} parent=1 // loop_body
      %s19 = ssub.s32 %s14, 1
      %s20 = ssub.s32 %s14, 2
      %s21 = sadd.s32 %s14, 1
      %s22 = ssub.s32 %s14, %s21
      %p23 = scmp.eq.s32.totalorder %s22, 0
      %s25 = sadd.s32 %s24, 1
      %s26 = scalar_select %p23, %s24, %s25
      %p29 = pneg %p23
      %p30 = scmp.eq.s32.totalorder %s14, 1
      %p31 = por %p29, %p30
      %p32 = scmp.ne.s32.totalorder %s24, %s27
      %p33 = scmp.eq.s32.totalorder %s14, 0
      %p34 = por %p32, %p33
      %p35 = scmp.ne.s32.totalorder %s24, %s27
      %p36 = scmp.eq.s32.totalorder %s19, 1
      %p37 = por %p35, %p36
      %p38 = scmp.ne.s32.totalorder %s27, %s28
      %p39 = scmp.eq.s32.totalorder %s19, 0
      %p40 = por %p38, %p39
      %p41 = scmp.ne.s32.totalorder %s27, %s28
      %p42 = scmp.eq.s32.totalorder %s20, 1
      %p43 = por %p41, %p42
      %p45 = scmp.ne.s32.totalorder %s28, %s44
      %p46 = scmp.eq.s32.totalorder %s20, 0
      %p47 = por %p45, %p46
      %s48 = ssub.s32 %s14, %s21
      %p49 = scmp.eq.s32.totalorder %s48, 0
      %s51 = sadd.s32 %s50, 1
      %s52 = scalar_select %p49, %s50, %s51
      %p55 = pneg %p49
      %p56 = scmp.eq.s32.totalorder %s14, 1
      %p57 = por %p55, %p56
      %p58 = scmp.ne.s32.totalorder %s50, %s53
      %p59 = scmp.eq.s32.totalorder %s14, 0
      %p60 = por %p58, %p59
      %p61 = scmp.ne.s32.totalorder %s50, %s53
      %p62 = scmp.eq.s32.totalorder %s19, 1
      %p63 = por %p61, %p62
      %p64 = scmp.ne.s32.totalorder %s53, %s54
      %p65 = scmp.eq.s32.totalorder %s19, 0
      %p66 = por %p64, %p65
      %p67 = scmp.ne.s32.totalorder %s53, %s54
      %p68 = scmp.eq.s32.totalorder %s20, 1
      %p69 = por %p67, %p68
      %p71 = scmp.ne.s32.totalorder %s54, %s70
      %p72 = scmp.eq.s32.totalorder %s20, 0
      %p73 = por %p71, %p72
      %s74 = ssub.s32 %s14, %s21
      %p75 = scmp.eq.s32.totalorder %s74, 0
      %s77 = sadd.s32 %s76, 1
      %s78 = scalar_select %p75, %s76, %s77
      %p81 = pneg %p75
      %p82 = scmp.eq.s32.totalorder %s14, 1
      %p83 = por %p81, %p82
      %p84 = scmp.ne.s32.totalorder %s76, %s79
      %p85 = scmp.eq.s32.totalorder %s14, 0
      %p86 = por %p84, %p85
      %p87 = scmp.ne.s32.totalorder %s76, %s79
      %p88 = scmp.eq.s32.totalorder %s19, 1
      %p89 = por %p87, %p88
      %p90 = scmp.ne.s32.totalorder %s79, %s80
      %p91 = scmp.eq.s32.totalorder %s19, 0
      %p92 = por %p90, %p91
      %p93 = scmp.ne.s32.totalorder %s79, %s80
      %p94 = scmp.eq.s32.totalorder %s20, 1
      %p95 = por %p93, %p94
      %p97 = scmp.ne.s32.totalorder %s80, %s96
      %p98 = scmp.eq.s32.totalorder %s20, 0
      %p99 = por %p97, %p98
      %p100 = scmp.le.s32.totalorder 1, %s14
      %p101 = scmp.lt.s32.totalorder %s14, 3
      %p102 = pnand %p100, %p101
      %p103 = pneg %p102
      // Predicated region
      $region9: #{tpu_custom_call.1} parent=5 // pred_check
        _
      $region10: #{tpu_custom_call.1} parent=5 // pred_check_branch
        %105 = sbr.rel (%p102) target = $region12
      $region11: #{tpu_custom_call.1} parent=5 // pred_region
        %s106 = ssub.s32 %s14, 1
      $region12: #{tpu_custom_call.1} parent=5 // pred_fallthru
        _
      %p107 = scmp.lt.s32.totalorder %s14, 2
      // Predicated region
      $region13: #{tpu_custom_call.1} parent=5 // pred_check
        %p108 = pneg %p107
      $region14: #{tpu_custom_call.1} parent=5 // pred_check_branch
        %110 = sbr.rel (%p108) target = $region16
      $region15: #{tpu_custom_call.1} parent=5 // pred_region
        // Predicated region
        $region17: #{tpu_custom_call.1} parent=15 // pred_check
          %p111 = pneg %p34
        $region18: #{tpu_custom_call.1} parent=15 // pred_check_branch
          %113 = sbr.rel (%p111) target = $region20
        $region19: #{tpu_custom_call.1} parent=15 // pred_region
          %s114 = sand.u32 %s24, 1
          %s115 = scalar_lea.sflag [#allocation3], %s114
          %s116 = sand.u32 %s24, 1
          %s117 = smul.addr %s116, 8
          %s118 = scalar_lea.vmem [#allocation2], %s117
          %s120 = ssub.s32 128, 128
          %121 = vsyncadd %s115, %s120
          %s122 = smul.addr %s14, 128
          %s123 = scalar_lea.hbm %s0, %s122
          %s125 = sshll.u32 %s118, 4
          %s126 = int_to_ptr.vmem [resolvable:$true] %s125
          %128 = dma.hbm_to_vmem [thread:$0]  %s123, 128, %s126, %s115
        $region20: #{tpu_custom_call.1} parent=15 // pred_fallthru
          _
        // Predicated region
        $region21: #{tpu_custom_call.1} parent=15 // pred_check
          %p129 = pneg %p60
        $region22: #{tpu_custom_call.1} parent=15 // pred_check_branch
          %131 = sbr.rel (%p129) target = $region24
        $region23: #{tpu_custom_call.1} parent=15 // pred_region
          %s132 = sand.u32 %s50, 1
          %s133 = scalar_lea.sflag [#allocation5], %s132
          %s134 = sand.u32 %s50, 1
          %s135 = smul.addr %s134, 8
          %s136 = scalar_lea.vmem [#allocation4], %s135
          %s138 = ssub.s32 128, 128
          %139 = vsyncadd %s133, %s138
          %s140 = smul.addr %s14, 128
          %s141 = scalar_lea.hbm %s1, %s140
          %s143 = sshll.u32 %s136, 4
          %s144 = int_to_ptr.vmem [resolvable:$true] %s143
          %146 = dma.hbm_to_vmem [thread:$0]  %s141, 128, %s144, %s133
        $region24: #{tpu_custom_call.1} parent=15 // pred_fallthru
          _
      $region16: #{tpu_custom_call.1} parent=5 // pred_fallthru
        _
      %p147 = scmp.le.s32.totalorder 1, %s14
      %p148 = scmp.lt.s32.totalorder %s14, 3
      %p149 = pnand %p147, %p148
      %p150 = pneg %p149
      // Predicated region
      $region25: #{tpu_custom_call.1} parent=5 // pred_check
        _
      $region26: #{tpu_custom_call.1} parent=5 // pred_check_branch
        %152 = sbr.rel (%p149) target = $region28
      $region27: #{tpu_custom_call.1} parent=5 // pred_region
        %s153 = ssub.s32 %s14, 1
        %s154 = sand.u32 %s27, 1
        %s155 = scalar_lea.sflag [#allocation3], %s154
        %s156 = sand.u32 %s27, 1
        %s157 = smul.addr %s156, 8
        %s158 = scalar_lea.vmem [#allocation2], %s157
        // Predicated region
        $region29: #{tpu_custom_call.1} parent=27 // pred_check
          %p159 = pneg %p40
        $region30: #{tpu_custom_call.1} parent=27 // pred_check_branch
          %161 = sbr.rel (%p159) target = $region32
        $region31: #{tpu_custom_call.1} parent=27 // pred_region
          %162 = dma.done %s155, 128
        $region32: #{tpu_custom_call.1} parent=27 // pred_fallthru
          _
        %s163 = sand.u32 %s53, 1
        %s164 = scalar_lea.sflag [#allocation5], %s163
        %s165 = sand.u32 %s53, 1
        %s166 = smul.addr %s165, 8
        %s167 = scalar_lea.vmem [#allocation4], %s166
        // Predicated region
        $region33: #{tpu_custom_call.1} parent=27 // pred_check
          %p168 = pneg %p66
        $region34: #{tpu_custom_call.1} parent=27 // pred_check_branch
          %170 = sbr.rel (%p168) target = $region36
        $region35: #{tpu_custom_call.1} parent=27 // pred_region
          %171 = dma.done %s164, 128
        $region36: #{tpu_custom_call.1} parent=27 // pred_fallthru
          _
        %s172 = sand.u32 %s27, 1
        %s173 = scalar_lea.sflag [#allocation3], %s172
        %s174 = sand.u32 %s27, 1
        %s175 = smul.addr %s174, 8
        %s176 = scalar_lea.vmem [#allocation2], %s175
        %p177 = pneg %p40
        %p178 = pneg %p37
        %s179 = sand.u32 %s53, 1
        %s180 = scalar_lea.sflag [#allocation5], %s179
        %s181 = sand.u32 %s53, 1
        %s182 = smul.addr %s181, 8
        %s183 = scalar_lea.vmem [#allocation4], %s182
        %p184 = pneg %p66
        %p185 = pneg %p63
        %p186 = pneg %p92
        %p187 = pneg %p89
        %p188 = scmp.lt.s32.totalorder %s19, 1
        %s189 = scalar_select %p188, %s19, 1
        %s190 = smul.addr %s189, 8
        %s191 = scalar_lea.vmem %s2, %s190
        %p192 = scmp.lt.s32.totalorder %s19, 1
        %s193 = scalar_select %p192, %s19, 1
        %s194 = smul.addr %s193, 8
        %s195 = scalar_lea.vmem %s2, %s194
        %v196 = vld [vmem:[%s158] sm:$0xff]
        %v197 = vld [vmem:[%s167] sm:$0xff]
        %vm198 = vcmask 64512
        %v200 = vsel %vm198, 0.125, 0
        %202 = vmatprep.subr.mxu0 0.0
        %203 = vmatpush1.msra.mxu0 %v196
        %204 = vmatprep.subr.mxu0 0.0
        %205 = vmatpush1.msra.mxu0 0.0
        %206 = vmatprep.subr.mxu0 0.0
        %207 = vmatpush1.msra.mxu0 0.0
        %208 = vmatprep.subr.mxu0 0.0
        %209 = vmatpush1.msra.mxu0 0.0
        %210 = vmatprep.subr.mxu0 0.0
        %211 = vmatpush1.msra.mxu0 0.0
        %212 = vmatprep.subr.mxu0 0.0
        %213 = vmatpush1.msra.mxu0 0.0
        %214 = vmatprep.subr.mxu0 0.0
        %215 = vmatpush1.msra.mxu0 0.0
        %216 = vmatprep.subr.mxu0 0.0
        %217 = vmatpush1.msra.mxu0 0.0
        %218 = vmatprep.subr.mxu0 0.0
        %219 = vmatpush1.msra.mxu0 0.0
        %220 = vmatprep.subr.mxu0 0.0
        %221 = vmatpush1.msra.mxu0 0.0
        %222 = vmatprep.subr.mxu0 0.0
        %223 = vmatpush1.msra.mxu0 0.0
        %224 = vmatprep.subr.mxu0 0.0
        %225 = vmatpush1.msra.mxu0 0.0
        %226 = vmatprep.subr.mxu0 0.0
        %227 = vmatpush1.msra.mxu0 0.0
        %228 = vmatprep.subr.mxu0 0.0
        %229 = vmatpush1.msra.mxu0 0.0
        %230 = vmatprep.subr.mxu0 0.0
        %231 = vmatpush1.msra.mxu0 0.0
        %232 = vmatprep.subr.mxu0 0.0
        %233 = vmatpush1.msra.mxu0 0.0
        %234 = vmatprep.subr.mxu0 0.0
        %235 = vmatpush1.msra.mxu0 0.0
        %236 = vmatprep.subr.mxu0 0.0
        %237 = vmatpush1.msra.mxu0 0.0
        %238 = vmatprep.subr.mxu0 0.0
        %239 = vmatpush1.msra.mxu0 0.0
        %240 = vmatprep.subr.mxu0 0.0
        %241 = vmatpush1.msra.mxu0 0.0
        %242 = vmatprep.subr.mxu0 0.0
        %243 = vmatpush1.msra.mxu0 0.0
        %244 = vmatprep.subr.mxu0 0.0
        %245 = vmatpush1.msra.mxu0 0.0
        %246 = vmatprep.subr.mxu0 0.0
        %247 = vmatpush1.msra.mxu0 0.0
        %248 = vmatprep.subr.mxu0 0.0
        %249 = vmatpush1.msra.mxu0 0.0
        %250 = vmatprep.subr.mxu0 0.0
        %251 = vmatpush1.msra.mxu0 0.0
        %252 = vmatprep.subr.mxu0 0.0
        %253 = vmatpush1.msra.mxu0 0.0
        %254 = vmatprep.subr.mxu0 0.0
        %255 = vmatpush1.msra.mxu0 0.0
        %256 = vmatprep.subr.mxu0 0.0
        %257 = vmatpush1.msra.mxu0 0.0
        %258 = vmatprep.subr.mxu0 0.0
        %259 = vmatpush1.msra.mxu0 0.0
        %260 = vmatprep.subr.mxu0 0.0
        %261 = vmatpush1.msra.mxu0 0.0
        %262 = vmatprep.subr.mxu0 0.0
        %263 = vmatpush1.msra.mxu0 0.0
        %264 = vmatprep.subr.mxu0 0.0
        %265 = vmatpush1.msra.mxu0 0.0
        %266 = vmatprep.mubr.f32.mxu0 0.0
        %267 = vmatmul.mubr.f32.gmra.mrb[0].mxu0 %v200
        %v268 = vpop.f32.mrb[0].mxu0
        %v269 = vadd.f32 0.0, %v268
        %v270 = vpop.f32.mrb[0].mxu0
        %271 = vdwg.mxu0
        %272 = vmatprep.subr.mxu0 0.0
        %273 = vmatpush1.msra.mxu0 %v197
        %274 = vmatprep.subr.mxu0 0.0
        %275 = vmatpush1.msra.mxu0 0.0
        %276 = vmatprep.subr.mxu0 0.0
        %277 = vmatpush1.msra.mxu0 0.0
        %278 = vmatprep.subr.mxu0 0.0
        %279 = vmatpush1.msra.mxu0 0.0
        %280 = vmatprep.subr.mxu0 0.0
        %281 = vmatpush1.msra.mxu0 0.0
        %282 = vmatprep.subr.mxu0 0.0
        %283 = vmatpush1.msra.mxu0 0.0
        %284 = vmatprep.subr.mxu0 0.0
        %285 = vmatpush1.msra.mxu0 0.0
        %286 = vmatprep.subr.mxu0 0.0
        %287 = vmatpush1.msra.mxu0 0.0
        %288 = vmatprep.subr.mxu0 0.0
        %289 = vmatpush1.msra.mxu0 0.0
        %290 = vmatprep.subr.mxu0 0.0
        %291 = vmatpush1.msra.mxu0 0.0
        %292 = vmatprep.subr.mxu0 0.0
        %293 = vmatpush1.msra.mxu0 0.0
        %294 = vmatprep.subr.mxu0 0.0
        %295 = vmatpush1.msra.mxu0 0.0
        %296 = vmatprep.subr.mxu0 0.0
        %297 = vmatpush1.msra.mxu0 0.0
        %298 = vmatprep.subr.mxu0 0.0
        %299 = vmatpush1.msra.mxu0 0.0
        %300 = vmatprep.subr.mxu0 0.0
        %301 = vmatpush1.msra.mxu0 0.0
        %302 = vmatprep.subr.mxu0 0.0
        %303 = vmatpush1.msra.mxu0 0.0
        %304 = vmatprep.subr.mxu0 0.0
        %305 = vmatpush1.msra.mxu0 0.0
        %306 = vmatprep.subr.mxu0 0.0
        %307 = vmatpush1.msra.mxu0 0.0
        %308 = vmatprep.subr.mxu0 0.0
        %309 = vmatpush1.msra.mxu0 0.0
        %310 = vmatprep.subr.mxu0 0.0
        %311 = vmatpush1.msra.mxu0 0.0
        %312 = vmatprep.subr.mxu0 0.0
        %313 = vmatpush1.msra.mxu0 0.0
        %314 = vmatprep.subr.mxu0 0.0
        %315 = vmatpush1.msra.mxu0 0.0
        %316 = vmatprep.subr.mxu0 0.0
        %317 = vmatpush1.msra.mxu0 0.0
        %318 = vmatprep.subr.mxu0 0.0
        %319 = vmatpush1.msra.mxu0 0.0
        %320 = vmatprep.subr.mxu0 0.0
        %321 = vmatpush1.msra.mxu0 0.0
        %322 = vmatprep.subr.mxu0 0.0
        %323 = vmatpush1.msra.mxu0 0.0
        %324 = vmatprep.subr.mxu0 0.0
        %325 = vmatpush1.msra.mxu0 0.0
        %326 = vmatprep.subr.mxu0 0.0
        %327 = vmatpush1.msra.mxu0 0.0
        %328 = vmatprep.subr.mxu0 0.0
        %329 = vmatpush1.msra.mxu0 0.0
        %330 = vmatprep.subr.mxu0 0.0
        %331 = vmatpush1.msra.mxu0 0.0
        %332 = vmatprep.subr.mxu0 0.0
        %333 = vmatpush1.msra.mxu0 0.0
        %334 = vmatprep.subr.mxu0 0.0
        %335 = vmatpush1.msra.mxu0 0.0
        %336 = vmatprep.mubr.f32.mxu0 0.0
        %337 = vmatmul.mubr.f32.gmra.mrb[0].mxu0 %v200
        %v338 = vpop.f32.mrb[0].mxu0
        %v339 = vadd.f32 0.0, %v338
        %v340 = vpop.f32.mrb[0].mxu0
        %341 = vdwg.mxu0
        %v342 = vlaneseq
        %v343 = vshrl.u32 %v342, 7
        %v344 = vsub.s32 0, %v343
        %v345 = vrot.slane %v269, %v344
        %v346 = vsub.f32 %v196, %v345
        %v347 = vlaneseq
        %v348 = vshrl.u32 %v347, 7
        %v349 = vsub.s32 0, %v348
        %v350 = vrot.slane %v339, %v349
        %v351 = vsub.f32 %v197, %v350
        %v352 = vsub.f32 %v269, %v339
        %v353 = vmul.f32 %v346, %v346
        %v354 = vmul.f32 %v351, %v351
        %355 = vmatprep.subr.mxu0 0.0
        %356 = vmatpush1.msra.mxu0 %v353
        %357 = vmatprep.subr.mxu0 0.0
        %358 = vmatpush1.msra.mxu0 0.0
        %359 = vmatprep.subr.mxu0 0.0
        %360 = vmatpush1.msra.mxu0 0.0
        %361 = vmatprep.subr.mxu0 0.0
        %362 = vmatpush1.msra.mxu0 0.0
        %363 = vmatprep.subr.mxu0 0.0
        %364 = vmatpush1.msra.mxu0 0.0
        %365 = vmatprep.subr.mxu0 0.0
        %366 = vmatpush1.msra.mxu0 0.0
        %367 = vmatprep.subr.mxu0 0.0
        %368 = vmatpush1.msra.mxu0 0.0
        %369 = vmatprep.subr.mxu0 0.0
        %370 = vmatpush1.msra.mxu0 0.0
        %371 = vmatprep.subr.mxu0 0.0
        %372 = vmatpush1.msra.mxu0 0.0
        %373 = vmatprep.subr.mxu0 0.0
        %374 = vmatpush1.msra.mxu0 0.0
        %375 = vmatprep.subr.mxu0 0.0
        %376 = vmatpush1.msra.mxu0 0.0
        %377 = vmatprep.subr.mxu0 0.0
        %378 = vmatpush1.msra.mxu0 0.0
        %379 = vmatprep.subr.mxu0 0.0
        %380 = vmatpush1.msra.mxu0 0.0
        %381 = vmatprep.subr.mxu0 0.0
        %382 = vmatpush1.msra.mxu0 0.0
        %383 = vmatprep.subr.mxu0 0.0
        %384 = vmatpush1.msra.mxu0 0.0
        %385 = vmatprep.subr.mxu0 0.0
        %386 = vmatpush1.msra.mxu0 0.0
        %387 = vmatprep.subr.mxu0 0.0
        %388 = vmatpush1.msra.mxu0 0.0
        %389 = vmatprep.subr.mxu0 0.0
        %390 = vmatpush1.msra.mxu0 0.0
        %391 = vmatprep.subr.mxu0 0.0
        %392 = vmatpush1.msra.mxu0 0.0
        %393 = vmatprep.subr.mxu0 0.0
        %394 = vmatpush1.msra.mxu0 0.0
        %395 = vmatprep.subr.mxu0 0.0
        %396 = vmatpush1.msra.mxu0 0.0
        %397 = vmatprep.subr.mxu0 0.0
        %398 = vmatpush1.msra.mxu0 0.0
        %399 = vmatprep.subr.mxu0 0.0
        %400 = vmatpush1.msra.mxu0 0.0
        %401 = vmatprep.subr.mxu0 0.0
        %402 = vmatpush1.msra.mxu0 0.0
        %403 = vmatprep.subr.mxu0 0.0
        %404 = vmatpush1.msra.mxu0 0.0
        %405 = vmatprep.subr.mxu0 0.0
        %406 = vmatpush1.msra.mxu0 0.0
        %407 = vmatprep.subr.mxu0 0.0
        %408 = vmatpush1.msra.mxu0 0.0
        %409 = vmatprep.subr.mxu0 0.0
        %410 = vmatpush1.msra.mxu0 0.0
        %411 = vmatprep.subr.mxu0 0.0
        %412 = vmatpush1.msra.mxu0 0.0
        %413 = vmatprep.subr.mxu0 0.0
        %414 = vmatpush1.msra.mxu0 0.0
        %415 = vmatprep.subr.mxu0 0.0
        %416 = vmatpush1.msra.mxu0 0.0
        %417 = vmatprep.subr.mxu0 0.0
        %418 = vmatpush1.msra.mxu0 0.0
        %419 = vmatprep.mubr.f32.mxu0 0.0
        %420 = vmatmul.mubr.f32.gmra.mrb[0].mxu0 %v200
        %v421 = vpop.f32.mrb[0].mxu0
        %v422 = vadd.f32 0.0, %v421
        %v423 = vpop.f32.mrb[0].mxu0
        %424 = vdwg.mxu0
        %425 = vmatprep.subr.mxu0 0.0
        %426 = vmatpush1.msra.mxu0 %v354
        %427 = vmatprep.subr.mxu0 0.0
        %428 = vmatpush1.msra.mxu0 0.0
        %429 = vmatprep.subr.mxu0 0.0
        %430 = vmatpush1.msra.mxu0 0.0
        %431 = vmatprep.subr.mxu0 0.0
        %432 = vmatpush1.msra.mxu0 0.0
        %433 = vmatprep.subr.mxu0 0.0
        %434 = vmatpush1.msra.mxu0 0.0
        %435 = vmatprep.subr.mxu0 0.0
        %436 = vmatpush1.msra.mxu0 0.0
        %437 = vmatprep.subr.mxu0 0.0
        %438 = vmatpush1.msra.mxu0 0.0
        %439 = vmatprep.subr.mxu0 0.0
        %440 = vmatpush1.msra.mxu0 0.0
        %441 = vmatprep.subr.mxu0 0.0
        %442 = vmatpush1.msra.mxu0 0.0
        %443 = vmatprep.subr.mxu0 0.0
        %444 = vmatpush1.msra.mxu0 0.0
        %445 = vmatprep.subr.mxu0 0.0
        %446 = vmatpush1.msra.mxu0 0.0
        %447 = vmatprep.subr.mxu0 0.0
        %448 = vmatpush1.msra.mxu0 0.0
        %449 = vmatprep.subr.mxu0 0.0
        %450 = vmatpush1.msra.mxu0 0.0
        %451 = vmatprep.subr.mxu0 0.0
        %452 = vmatpush1.msra.mxu0 0.0
        %453 = vmatprep.subr.mxu0 0.0
        %454 = vmatpush1.msra.mxu0 0.0
        %455 = vmatprep.subr.mxu0 0.0
        %456 = vmatpush1.msra.mxu0 0.0
        %457 = vmatprep.subr.mxu0 0.0
        %458 = vmatpush1.msra.mxu0 0.0
        %459 = vmatprep.subr.mxu0 0.0
        %460 = vmatpush1.msra.mxu0 0.0
        %461 = vmatprep.subr.mxu0 0.0
        %462 = vmatpush1.msra.mxu0 0.0
        %463 = vmatprep.subr.mxu0 0.0
        %464 = vmatpush1.msra.mxu0 0.0
        %465 = vmatprep.subr.mxu0 0.0
        %466 = vmatpush1.msra.mxu0 0.0
        %467 = vmatprep.subr.mxu0 0.0
        %468 = vmatpush1.msra.mxu0 0.0
        %469 = vmatprep.subr.mxu0 0.0
        %470 = vmatpush1.msra.mxu0 0.0
        %471 = vmatprep.subr.mxu0 0.0
        %472 = vmatpush1.msra.mxu0 0.0
        %473 = vmatprep.subr.mxu0 0.0
        %474 = vmatpush1.msra.mxu0 0.0
        %475 = vmatprep.subr.mxu0 0.0
        %476 = vmatpush1.msra.mxu0 0.0
        %477 = vmatprep.subr.mxu0 0.0
        %478 = vmatpush1.msra.mxu0 0.0
        %479 = vmatprep.subr.mxu0 0.0
        %480 = vmatpush1.msra.mxu0 0.0
        %481 = vmatprep.subr.mxu0 0.0
        %482 = vmatpush1.msra.mxu0 0.0
        %483 = vmatprep.subr.mxu0 0.0
        %484 = vmatpush1.msra.mxu0 0.0
        %485 = vmatprep.subr.mxu0 0.0
        %486 = vmatpush1.msra.mxu0 0.0
        %487 = vmatprep.subr.mxu0 0.0
        %488 = vmatpush1.msra.mxu0 0.0
        %489 = vmatprep.mubr.f32.mxu0 0.0
        %490 = vmatmul.mubr.f32.gmra.mrb[0].mxu0 %v200
        %v491 = vpop.f32.mrb[0].mxu0
        %v492 = vadd.f32 0.0, %v491
        %v493 = vpop.f32.mrb[0].mxu0
        %494 = vdwg.mxu0
        %v495 = vsub.f32 %v422, %v492
        %v496 = vmul.f32 %v353, %v346
        %v497 = vmul.f32 %v354, %v351
        %498 = vmatprep.subr.mxu0 0.0
        %499 = vmatpush1.msra.mxu0 %v496
        %500 = vmatprep.subr.mxu0 0.0
        %501 = vmatpush1.msra.mxu0 0.0
        %502 = vmatprep.subr.mxu0 0.0
        %503 = vmatpush1.msra.mxu0 0.0
        %504 = vmatprep.subr.mxu0 0.0
        %505 = vmatpush1.msra.mxu0 0.0
        %506 = vmatprep.subr.mxu0 0.0
        %507 = vmatpush1.msra.mxu0 0.0
        %508 = vmatprep.subr.mxu0 0.0
        %509 = vmatpush1.msra.mxu0 0.0
        %510 = vmatprep.subr.mxu0 0.0
        %511 = vmatpush1.msra.mxu0 0.0
        %512 = vmatprep.subr.mxu0 0.0
        %513 = vmatpush1.msra.mxu0 0.0
        %514 = vmatprep.subr.mxu0 0.0
        %515 = vmatpush1.msra.mxu0 0.0
        %516 = vmatprep.subr.mxu0 0.0
        %517 = vmatpush1.msra.mxu0 0.0
        %518 = vmatprep.subr.mxu0 0.0
        %519 = vmatpush1.msra.mxu0 0.0
        %520 = vmatprep.subr.mxu0 0.0
        %521 = vmatpush1.msra.mxu0 0.0
        %522 = vmatprep.subr.mxu0 0.0
        %523 = vmatpush1.msra.mxu0 0.0
        %524 = vmatprep.subr.mxu0 0.0
        %525 = vmatpush1.msra.mxu0 0.0
        %526 = vmatprep.subr.mxu0 0.0
        %527 = vmatpush1.msra.mxu0 0.0
        %528 = vmatprep.subr.mxu0 0.0
        %529 = vmatpush1.msra.mxu0 0.0
        %530 = vmatprep.subr.mxu0 0.0
        %531 = vmatpush1.msra.mxu0 0.0
        %532 = vmatprep.subr.mxu0 0.0
        %533 = vmatpush1.msra.mxu0 0.0
        %534 = vmatprep.subr.mxu0 0.0
        %535 = vmatpush1.msra.mxu0 0.0
        %536 = vmatprep.subr.mxu0 0.0
        %537 = vmatpush1.msra.mxu0 0.0
        %538 = vmatprep.subr.mxu0 0.0
        %539 = vmatpush1.msra.mxu0 0.0
        %540 = vmatprep.subr.mxu0 0.0
        %541 = vmatpush1.msra.mxu0 0.0
        %542 = vmatprep.subr.mxu0 0.0
        %543 = vmatpush1.msra.mxu0 0.0
        %544 = vmatprep.subr.mxu0 0.0
        %545 = vmatpush1.msra.mxu0 0.0
        %546 = vmatprep.subr.mxu0 0.0
        %547 = vmatpush1.msra.mxu0 0.0
        %548 = vmatprep.subr.mxu0 0.0
        %549 = vmatpush1.msra.mxu0 0.0
        %550 = vmatprep.subr.mxu0 0.0
        %551 = vmatpush1.msra.mxu0 0.0
        %552 = vmatprep.subr.mxu0 0.0
        %553 = vmatpush1.msra.mxu0 0.0
        %554 = vmatprep.subr.mxu0 0.0
        %555 = vmatpush1.msra.mxu0 0.0
        %556 = vmatprep.subr.mxu0 0.0
        %557 = vmatpush1.msra.mxu0 0.0
        %558 = vmatprep.subr.mxu0 0.0
        %559 = vmatpush1.msra.mxu0 0.0
        %560 = vmatprep.subr.mxu0 0.0
        %561 = vmatpush1.msra.mxu0 0.0
        %562 = vmatprep.mubr.f32.mxu0 0.0
        %563 = vmatmul.mubr.f32.gmra.mrb[0].mxu0 %v200
        %v564 = vpop.f32.mrb[0].mxu0
        %v565 = vadd.f32 0.0, %v564
        %v566 = vpop.f32.mrb[0].mxu0
        %567 = vdwg.mxu0
        %568 = vmatprep.subr.mxu0 0.0
        %569 = vmatpush1.msra.mxu0 %v497
        %570 = vmatprep.subr.mxu0 0.0
        %571 = vmatpush1.msra.mxu0 0.0
        %572 = vmatprep.subr.mxu0 0.0
        %573 = vmatpush1.msra.mxu0 0.0
        %574 = vmatprep.subr.mxu0 0.0
        %575 = vmatpush1.msra.mxu0 0.0
        %576 = vmatprep.subr.mxu0 0.0
        %577 = vmatpush1.msra.mxu0 0.0
        %578 = vmatprep.subr.mxu0 0.0
        %579 = vmatpush1.msra.mxu0 0.0
        %580 = vmatprep.subr.mxu0 0.0
        %581 = vmatpush1.msra.mxu0 0.0
        %582 = vmatprep.subr.mxu0 0.0
        %583 = vmatpush1.msra.mxu0 0.0
        %584 = vmatprep.subr.mxu0 0.0
        %585 = vmatpush1.msra.mxu0 0.0
        %586 = vmatprep.subr.mxu0 0.0
        %587 = vmatpush1.msra.mxu0 0.0
        %588 = vmatprep.subr.mxu0 0.0
        %589 = vmatpush1.msra.mxu0 0.0
        %590 = vmatprep.subr.mxu0 0.0
        %591 = vmatpush1.msra.mxu0 0.0
        %592 = vmatprep.subr.mxu0 0.0
        %593 = vmatpush1.msra.mxu0 0.0
        %594 = vmatprep.subr.mxu0 0.0
        %595 = vmatpush1.msra.mxu0 0.0
        %596 = vmatprep.subr.mxu0 0.0
        %597 = vmatpush1.msra.mxu0 0.0
        %598 = vmatprep.subr.mxu0 0.0
        %599 = vmatpush1.msra.mxu0 0.0
        %600 = vmatprep.subr.mxu0 0.0
        %601 = vmatpush1.msra.mxu0 0.0
        %602 = vmatprep.subr.mxu0 0.0
        %603 = vmatpush1.msra.mxu0 0.0
        %604 = vmatprep.subr.mxu0 0.0
        %605 = vmatpush1.msra.mxu0 0.0
        %606 = vmatprep.subr.mxu0 0.0
        %607 = vmatpush1.msra.mxu0 0.0
        %608 = vmatprep.subr.mxu0 0.0
        %609 = vmatpush1.msra.mxu0 0.0
        %610 = vmatprep.subr.mxu0 0.0
        %611 = vmatpush1.msra.mxu0 0.0
        %612 = vmatprep.subr.mxu0 0.0
        %613 = vmatpush1.msra.mxu0 0.0
        %614 = vmatprep.subr.mxu0 0.0
        %615 = vmatpush1.msra.mxu0 0.0
        %616 = vmatprep.subr.mxu0 0.0
        %617 = vmatpush1.msra.mxu0 0.0
        %618 = vmatprep.subr.mxu0 0.0
        %619 = vmatpush1.msra.mxu0 0.0
        %620 = vmatprep.subr.mxu0 0.0
        %621 = vmatpush1.msra.mxu0 0.0
        %622 = vmatprep.subr.mxu0 0.0
        %623 = vmatpush1.msra.mxu0 0.0
        %624 = vmatprep.subr.mxu0 0.0
        %625 = vmatpush1.msra.mxu0 0.0
        %626 = vmatprep.subr.mxu0 0.0
        %627 = vmatpush1.msra.mxu0 0.0
        %628 = vmatprep.subr.mxu0 0.0
        %629 = vmatpush1.msra.mxu0 0.0
        %630 = vmatprep.subr.mxu0 0.0
        %631 = vmatpush1.msra.mxu0 0.0
        %632 = vmatprep.mubr.f32.mxu0 0.0
        %633 = vmatmul.mubr.f32.gmra.mrb[0].mxu0 %v200
        %v634 = vpop.f32.mrb[0].mxu0
        %v635 = vadd.f32 0.0, %v634
        %v636 = vpop.f32.mrb[0].mxu0
        %637 = vdwg.mxu0
        %v638 = vsub.f32 %v565, %v635
        %v639 = vmul.f32 %v496, %v346
        %v640 = vmul.f32 %v497, %v351
        %641 = vmatprep.subr.mxu0 0.0
        %642 = vmatpush1.msra.mxu0 %v639
        %643 = vmatprep.subr.mxu0 0.0
        %644 = vmatpush1.msra.mxu0 0.0
        %645 = vmatprep.subr.mxu0 0.0
        %646 = vmatpush1.msra.mxu0 0.0
        %647 = vmatprep.subr.mxu0 0.0
        %648 = vmatpush1.msra.mxu0 0.0
        %649 = vmatprep.subr.mxu0 0.0
        %650 = vmatpush1.msra.mxu0 0.0
        %651 = vmatprep.subr.mxu0 0.0
        %652 = vmatpush1.msra.mxu0 0.0
        %653 = vmatprep.subr.mxu0 0.0
        %654 = vmatpush1.msra.mxu0 0.0
        %655 = vmatprep.subr.mxu0 0.0
        %656 = vmatpush1.msra.mxu0 0.0
        %657 = vmatprep.subr.mxu0 0.0
        %658 = vmatpush1.msra.mxu0 0.0
        %659 = vmatprep.subr.mxu0 0.0
        %660 = vmatpush1.msra.mxu0 0.0
        %661 = vmatprep.subr.mxu0 0.0
        %662 = vmatpush1.msra.mxu0 0.0
        %663 = vmatprep.subr.mxu0 0.0
        %664 = vmatpush1.msra.mxu0 0.0
        %665 = vmatprep.subr.mxu0 0.0
        %666 = vmatpush1.msra.mxu0 0.0
        %667 = vmatprep.subr.mxu0 0.0
        %668 = vmatpush1.msra.mxu0 0.0
        %669 = vmatprep.subr.mxu0 0.0
        %670 = vmatpush1.msra.mxu0 0.0
        %671 = vmatprep.subr.mxu0 0.0
        %672 = vmatpush1.msra.mxu0 0.0
        %673 = vmatprep.subr.mxu0 0.0
        %674 = vmatpush1.msra.mxu0 0.0
        %675 = vmatprep.subr.mxu0 0.0
        %676 = vmatpush1.msra.mxu0 0.0
        %677 = vmatprep.subr.mxu0 0.0
        %678 = vmatpush1.msra.mxu0 0.0
        %679 = vmatprep.subr.mxu0 0.0
        %680 = vmatpush1.msra.mxu0 0.0
        %681 = vmatprep.subr.mxu0 0.0
        %682 = vmatpush1.msra.mxu0 0.0
        %683 = vmatprep.subr.mxu0 0.0
        %684 = vmatpush1.msra.mxu0 0.0
        %685 = vmatprep.subr.mxu0 0.0
        %686 = vmatpush1.msra.mxu0 0.0
        %687 = vmatprep.subr.mxu0 0.0
        %688 = vmatpush1.msra.mxu0 0.0
        %689 = vmatprep.subr.mxu0 0.0
        %690 = vmatpush1.msra.mxu0 0.0
        %691 = vmatprep.subr.mxu0 0.0
        %692 = vmatpush1.msra.mxu0 0.0
        %693 = vmatprep.subr.mxu0 0.0
        %694 = vmatpush1.msra.mxu0 0.0
        %695 = vmatprep.subr.mxu0 0.0
        %696 = vmatpush1.msra.mxu0 0.0
        %697 = vmatprep.subr.mxu0 0.0
        %698 = vmatpush1.msra.mxu0 0.0
        %699 = vmatprep.subr.mxu0 0.0
        %700 = vmatpush1.msra.mxu0 0.0
        %701 = vmatprep.subr.mxu0 0.0
        %702 = vmatpush1.msra.mxu0 0.0
        %703 = vmatprep.subr.mxu0 0.0
        %704 = vmatpush1.msra.mxu0 0.0
        %705 = vmatprep.mubr.f32.mxu0 0.0
        %706 = vmatmul.mubr.f32.gmra.mrb[0].mxu0 %v200
        %v707 = vpop.f32.mrb[0].mxu0
        %v708 = vadd.f32 0.0, %v707
        %v709 = vpop.f32.mrb[0].mxu0
        %710 = vdwg.mxu0
        %711 = vmatprep.subr.mxu0 0.0
        %712 = vmatpush1.msra.mxu0 %v640
        %713 = vmatprep.subr.mxu0 0.0
        %714 = vmatpush1.msra.mxu0 0.0
        %715 = vmatprep.subr.mxu0 0.0
        %716 = vmatpush1.msra.mxu0 0.0
        %717 = vmatprep.subr.mxu0 0.0
        %718 = vmatpush1.msra.mxu0 0.0
        %719 = vmatprep.subr.mxu0 0.0
        %720 = vmatpush1.msra.mxu0 0.0
        %721 = vmatprep.subr.mxu0 0.0
        %722 = vmatpush1.msra.mxu0 0.0
        %723 = vmatprep.subr.mxu0 0.0
        %724 = vmatpush1.msra.mxu0 0.0
        %725 = vmatprep.subr.mxu0 0.0
        %726 = vmatpush1.msra.mxu0 0.0
        %727 = vmatprep.subr.mxu0 0.0
        %728 = vmatpush1.msra.mxu0 0.0
        %729 = vmatprep.subr.mxu0 0.0
        %730 = vmatpush1.msra.mxu0 0.0
        %731 = vmatprep.subr.mxu0 0.0
        %732 = vmatpush1.msra.mxu0 0.0
        %733 = vmatprep.subr.mxu0 0.0
        %734 = vmatpush1.msra.mxu0 0.0
        %735 = vmatprep.subr.mxu0 0.0
        %736 = vmatpush1.msra.mxu0 0.0
        %737 = vmatprep.subr.mxu0 0.0
        %738 = vmatpush1.msra.mxu0 0.0
        %739 = vmatprep.subr.mxu0 0.0
        %740 = vmatpush1.msra.mxu0 0.0
        %741 = vmatprep.subr.mxu0 0.0
        %742 = vmatpush1.msra.mxu0 0.0
        %743 = vmatprep.subr.mxu0 0.0
        %744 = vmatpush1.msra.mxu0 0.0
        %745 = vmatprep.subr.mxu0 0.0
        %746 = vmatpush1.msra.mxu0 0.0
        %747 = vmatprep.subr.mxu0 0.0
        %748 = vmatpush1.msra.mxu0 0.0
        %749 = vmatprep.subr.mxu0 0.0
        %750 = vmatpush1.msra.mxu0 0.0
        %751 = vmatprep.subr.mxu0 0.0
        %752 = vmatpush1.msra.mxu0 0.0
        %753 = vmatprep.subr.mxu0 0.0
        %754 = vmatpush1.msra.mxu0 0.0
        %755 = vmatprep.subr.mxu0 0.0
        %756 = vmatpush1.msra.mxu0 0.0
        %757 = vmatprep.subr.mxu0 0.0
        %758 = vmatpush1.msra.mxu0 0.0
        %759 = vmatprep.subr.mxu0 0.0
        %760 = vmatpush1.msra.mxu0 0.0
        %761 = vmatprep.subr.mxu0 0.0
        %762 = vmatpush1.msra.mxu0 0.0
        %763 = vmatprep.subr.mxu0 0.0
        %764 = vmatpush1.msra.mxu0 0.0
        %765 = vmatprep.subr.mxu0 0.0
        %766 = vmatpush1.msra.mxu0 0.0
        %767 = vmatprep.subr.mxu0 0.0
        %768 = vmatpush1.msra.mxu0 0.0
        %769 = vmatprep.subr.mxu0 0.0
        %770 = vmatpush1.msra.mxu0 0.0
        %771 = vmatprep.subr.mxu0 0.0
        %772 = vmatpush1.msra.mxu0 0.0
        %773 = vmatprep.subr.mxu0 0.0
        %774 = vmatpush1.msra.mxu0 0.0
        %775 = vmatprep.mubr.f32.mxu0 0.0
        %776 = vmatmul.mubr.f32.gmra.mrb[0].mxu0 %v200
        %v777 = vpop.f32.mrb[0].mxu0
        %v778 = vadd.f32 0.0, %v777
        %v779 = vpop.f32.mrb[0].mxu0
        %780 = vdwg.mxu0
        %v781 = vsub.f32 %v708, %v778
        %v782 = vmul.f32 %v639, %v346
        %v783 = vmul.f32 %v640, %v351
        %784 = vmatprep.subr.mxu0 0.0
        %785 = vmatpush1.msra.mxu0 %v782
        %786 = vmatprep.subr.mxu0 0.0
        %787 = vmatpush1.msra.mxu0 0.0
        %788 = vmatprep.subr.mxu0 0.0
        %789 = vmatpush1.msra.mxu0 0.0
        %790 = vmatprep.subr.mxu0 0.0
        %791 = vmatpush1.msra.mxu0 0.0
        %792 = vmatprep.subr.mxu0 0.0
        %793 = vmatpush1.msra.mxu0 0.0
        %794 = vmatprep.subr.mxu0 0.0
        %795 = vmatpush1.msra.mxu0 0.0
        %796 = vmatprep.subr.mxu0 0.0
        %797 = vmatpush1.msra.mxu0 0.0
        %798 = vmatprep.subr.mxu0 0.0
        %799 = vmatpush1.msra.mxu0 0.0
        %800 = vmatprep.subr.mxu0 0.0
        %801 = vmatpush1.msra.mxu0 0.0
        %802 = vmatprep.subr.mxu0 0.0
        %803 = vmatpush1.msra.mxu0 0.0
        %804 = vmatprep.subr.mxu0 0.0
        %805 = vmatpush1.msra.mxu0 0.0
        %806 = vmatprep.subr.mxu0 0.0
        %807 = vmatpush1.msra.mxu0 0.0
        %808 = vmatprep.subr.mxu0 0.0
        %809 = vmatpush1.msra.mxu0 0.0
        %810 = vmatprep.subr.mxu0 0.0
        %811 = vmatpush1.msra.mxu0 0.0
        %812 = vmatprep.subr.mxu0 0.0
        %813 = vmatpush1.msra.mxu0 0.0
        %814 = vmatprep.subr.mxu0 0.0
        %815 = vmatpush1.msra.mxu0 0.0
        %816 = vmatprep.subr.mxu0 0.0
        %817 = vmatpush1.msra.mxu0 0.0
        %818 = vmatprep.subr.mxu0 0.0
        %819 = vmatpush1.msra.mxu0 0.0
        %820 = vmatprep.subr.mxu0 0.0
        %821 = vmatpush1.msra.mxu0 0.0
        %822 = vmatprep.subr.mxu0 0.0
        %823 = vmatpush1.msra.mxu0 0.0
        %824 = vmatprep.subr.mxu0 0.0
        %825 = vmatpush1.msra.mxu0 0.0
        %826 = vmatprep.subr.mxu0 0.0
        %827 = vmatpush1.msra.mxu0 0.0
        %828 = vmatprep.subr.mxu0 0.0
        %829 = vmatpush1.msra.mxu0 0.0
        %830 = vmatprep.subr.mxu0 0.0
        %831 = vmatpush1.msra.mxu0 0.0
        %832 = vmatprep.subr.mxu0 0.0
        %833 = vmatpush1.msra.mxu0 0.0
        %834 = vmatprep.subr.mxu0 0.0
        %835 = vmatpush1.msra.mxu0 0.0
        %836 = vmatprep.subr.mxu0 0.0
        %837 = vmatpush1.msra.mxu0 0.0
        %838 = vmatprep.subr.mxu0 0.0
        %839 = vmatpush1.msra.mxu0 0.0
        %840 = vmatprep.subr.mxu0 0.0
        %841 = vmatpush1.msra.mxu0 0.0
        %842 = vmatprep.subr.mxu0 0.0
        %843 = vmatpush1.msra.mxu0 0.0
        %844 = vmatprep.subr.mxu0 0.0
        %845 = vmatpush1.msra.mxu0 0.0
        %846 = vmatprep.subr.mxu0 0.0
        %847 = vmatpush1.msra.mxu0 0.0
        %848 = vmatprep.mubr.f32.mxu0 0.0
        %849 = vmatmul.mubr.f32.gmra.mrb[0].mxu0 %v200
        %v850 = vpop.f32.mrb[0].mxu0
        %v851 = vadd.f32 0.0, %v850
        %v852 = vpop.f32.mrb[0].mxu0
        %853 = vdwg.mxu0
        %854 = vmatprep.subr.mxu0 0.0
        %855 = vmatpush1.msra.mxu0 %v783
        %856 = vmatprep.subr.mxu0 0.0
        %857 = vmatpush1.msra.mxu0 0.0
        %858 = vmatprep.subr.mxu0 0.0
        %859 = vmatpush1.msra.mxu0 0.0
        %860 = vmatprep.subr.mxu0 0.0
        %861 = vmatpush1.msra.mxu0 0.0
        %862 = vmatprep.subr.mxu0 0.0
        %863 = vmatpush1.msra.mxu0 0.0
        %864 = vmatprep.subr.mxu0 0.0
        %865 = vmatpush1.msra.mxu0 0.0
        %866 = vmatprep.subr.mxu0 0.0
        %867 = vmatpush1.msra.mxu0 0.0
        %868 = vmatprep.subr.mxu0 0.0
        %869 = vmatpush1.msra.mxu0 0.0
        %870 = vmatprep.subr.mxu0 0.0
        %871 = vmatpush1.msra.mxu0 0.0
        %872 = vmatprep.subr.mxu0 0.0
        %873 = vmatpush1.msra.mxu0 0.0
        %874 = vmatprep.subr.mxu0 0.0
        %875 = vmatpush1.msra.mxu0 0.0
        %876 = vmatprep.subr.mxu0 0.0
        %877 = vmatpush1.msra.mxu0 0.0
        %878 = vmatprep.subr.mxu0 0.0
        %879 = vmatpush1.msra.mxu0 0.0
        %880 = vmatprep.subr.mxu0 0.0
        %881 = vmatpush1.msra.mxu0 0.0
        %882 = vmatprep.subr.mxu0 0.0
        %883 = vmatpush1.msra.mxu0 0.0
        %884 = vmatprep.subr.mxu0 0.0
        %885 = vmatpush1.msra.mxu0 0.0
        %886 = vmatprep.subr.mxu0 0.0
        %887 = vmatpush1.msra.mxu0 0.0
        %888 = vmatprep.subr.mxu0 0.0
        %889 = vmatpush1.msra.mxu0 0.0
        %890 = vmatprep.subr.mxu0 0.0
        %891 = vmatpush1.msra.mxu0 0.0
        %892 = vmatprep.subr.mxu0 0.0
        %893 = vmatpush1.msra.mxu0 0.0
        %894 = vmatprep.subr.mxu0 0.0
        %895 = vmatpush1.msra.mxu0 0.0
        %896 = vmatprep.subr.mxu0 0.0
        %897 = vmatpush1.msra.mxu0 0.0
        %898 = vmatprep.subr.mxu0 0.0
        %899 = vmatpush1.msra.mxu0 0.0
        %900 = vmatprep.subr.mxu0 0.0
        %901 = vmatpush1.msra.mxu0 0.0
        %902 = vmatprep.subr.mxu0 0.0
        %903 = vmatpush1.msra.mxu0 0.0
        %904 = vmatprep.subr.mxu0 0.0
        %905 = vmatpush1.msra.mxu0 0.0
        %906 = vmatprep.subr.mxu0 0.0
        %907 = vmatpush1.msra.mxu0 0.0
        %908 = vmatprep.subr.mxu0 0.0
        %909 = vmatpush1.msra.mxu0 0.0
        %910 = vmatprep.subr.mxu0 0.0
        %911 = vmatpush1.msra.mxu0 0.0
        %912 = vmatprep.subr.mxu0 0.0
        %913 = vmatpush1.msra.mxu0 0.0
        %914 = vmatprep.subr.mxu0 0.0
        %915 = vmatpush1.msra.mxu0 0.0
        %916 = vmatprep.subr.mxu0 0.0
        %917 = vmatpush1.msra.mxu0 0.0
        %918 = vmatprep.mubr.f32.mxu0 0.0
        %919 = vmatmul.mubr.f32.gmra.mrb[0].mxu0 %v200
        %v920 = vpop.f32.mrb[0].mxu0
        %v921 = vadd.f32 0.0, %v920
        %v922 = vpop.f32.mrb[0].mxu0
        %923 = vdwg.mxu0
        %v924 = vsub.f32 %v851, %v921
        %v926 = vrot.slane %v495, 7
        %v929 = vrot.slane %v638, 6
        %v932 = vrot.slane %v781, 5
        %v935 = vrot.slane %v924, 4
        %vm937 = vcmask 1040384
        %v938 = vsel %vm937, %v352, %v926
        %vm939 = vcmask 1041408
        %v940 = vsel %vm939, %v938, %v929
        %vm941 = vcmask 1042432
        %v942 = vsel %vm941, %v940, %v932
        %vm943 = vcmask 1043456
        %v944 = vsel %vm943, %v942, %v935
        %945 = vst [vmem:[%s195] sm:$0x1f] %v944
        %p946 = scmp.lt.s32.totalorder %s19, 1
        %s947 = scalar_select %p946, %s19, 1
        %s948 = smul.addr %s947, 8
        %s949 = scalar_lea.vmem %s2, %s948
        // Predicated region
        $region37: #{tpu_custom_call.1} parent=27 // pred_check
          %p950 = pneg %p89
        $region38: #{tpu_custom_call.1} parent=27 // pred_check_branch
          %952 = sbr.rel (%p950) target = $region40
        $region39: #{tpu_custom_call.1} parent=27 // pred_region
          _
        $region40: #{tpu_custom_call.1} parent=27 // pred_fallthru
          _
      $region28: #{tpu_custom_call.1} parent=5 // pred_fallthru
        _
      %p953 = scmp.le.s32.totalorder 2, %s14
      // Predicated region
      $region41: #{tpu_custom_call.1} parent=5 // pred_check
        %p954 = pneg %p953
      $region42: #{tpu_custom_call.1} parent=5 // pred_check_branch
        %956 = sbr.rel (%p954) target = $region44
      $region43: #{tpu_custom_call.1} parent=5 // pred_region
        %s957 = ssub.s32 %s14, 2
        // Predicated region
        $region45: #{tpu_custom_call.1} parent=43 // pred_check
          %p958 = pneg %p95
        $region46: #{tpu_custom_call.1} parent=43 // pred_check_branch
          %960 = sbr.rel (%p958) target = $region48
        $region47: #{tpu_custom_call.1} parent=43 // pred_region
          %p961 = scmp.lt.s32.totalorder %s20, 1
          %s962 = scalar_select %p961, %s20, 1
          %s963 = smul.addr %s962, 8
          %s964 = scalar_lea.vmem %s2, %s963
        $region48: #{tpu_custom_call.1} parent=43 // pred_fallthru
          _
      $region44: #{tpu_custom_call.1} parent=5 // pred_fallthru
        _
    $region6: #{tpu_custom_call.1} parent=1 // loop_footer
      %s18 = sadd.s32 1, %s14
    $region7: #{tpu_custom_call.1} parent=1 // loop_footer_branch
      %13 = sbr.rel target = $region3
    $region8: #{tpu_custom_call.1} parent=1 // loop_exit
      _
    %965 = vsyncpa [#allocation3], 1
    %s966 = scalar_lea.sflag [#allocation3], 1
    %967 = vsyncpa %s966, 1
    %968 = vsyncpa [#allocation5], 1
    %s969 = scalar_lea.sflag [#allocation5], 1
    %970 = vsyncpa %s969, 1

</llo_original>
